<compile_context>
chip_gen: v6e
topology: v6e:2x2x1
jax: 0.10.0
libtpu: 0.0.40
codegen_flags: <defaults>
</compile_context>

<pallas_src>
import jax
import jax.numpy as jnp
from jax.experimental import pallas as pl
from jax.experimental.pallas import tpu as pltpu


def _round_up(x, m):
    return ((x + m - 1) // m) * m


# ----------------------------------------------------------------------------
# Fused kernel
# ----------------------------------------------------------------------------
def make_fused_kernel(B, S, L):
    BS = B * S

    def kernel(tok_ref, mask_ref, emb_ref, wt_ref, b_ref, y_ref,
               loss_ref, prob_ref, pred_ref):
        Vp = emb_ref.shape[0]
        Lp = wt_ref.shape[1]

        # ---- fused embedding "gather": one-hot matmul on the MXU ------------
        tok = tok_ref[...]                                          # [BS, 1] i32
        v_lane = jax.lax.broadcasted_iota(jnp.int32, (BS, Vp), 1)   # [BS, Vp]
        one_hot = (v_lane == tok).astype(jnp.bfloat16)              # [BS, Vp]
        emb_bs = jnp.dot(one_hot, emb_ref[...],
                         preferred_element_type=jnp.float32)        # [BS, H] f32
        # rows are exact bf16 table rows -> down-cast is lossless
        emb_bs = emb_bs.astype(jnp.bfloat16)

        # ---- fused masked-mean pooling as a [B, BS] @ [BS, H] matmul --------
        r = jax.lax.broadcasted_iota(jnp.int32, (B, BS), 0)
        c = jax.lax.broadcasted_iota(jnp.int32, (B, BS), 1)
        belongs = (c >= r * S) & (c < (r + 1) * S)                  # [B, BS]
        mask_b = mask_ref[...]                                      # [1, BS] f32
        pool_w = jnp.where(belongs, mask_b, 0.0)                    # [B, BS] (0/1)
        denom = jnp.maximum(jnp.sum(pool_w, axis=-1, keepdims=True), 1e-6)
        pooled = jnp.dot(pool_w.astype(jnp.bfloat16), emb_bs,
                         preferred_element_type=jnp.float32)        # [B, H] f32
        pooled = pooled * pl.reciprocal(denom, approx=False)        # masked mean

        # ---- classifier: logits = pooled @ W^T + b (lane-dense, Lp=128) -----
        logits = jnp.dot(pooled.astype(jnp.bfloat16), wt_ref[...],
                         preferred_element_type=jnp.float32) + b_ref[...]
        lane = jax.lax.broadcasted_iota(jnp.int32, (B, Lp), 1)      # [B, Lp]
        logits = jnp.where(lane < L, logits, -jnp.inf)              # mask pad lanes

        # ---- softmax (f32 elementwise; reciprocal on the EUP) ---------------
        m = jnp.max(logits, axis=-1, keepdims=True)                 # [B, 1]
        e = jnp.exp(logits - m)                                     # [B, Lp]
        s = jnp.sum(e, axis=-1, keepdims=True)                      # [B, 1]
        prob_ref[...] = e * pl.reciprocal(s, approx=True)           # [B, Lp]

        # ---- cross-entropy (mean over the real batch) -----------------------
        labels = y_ref[...]                                         # [B, 1] i32
        log_z = m + jnp.log(s)                                      # [B, 1]
        true_logit = jnp.sum(jnp.where(lane == labels, logits, 0.0),
                             axis=-1, keepdims=True)                # [B, 1]
        loss_ref[0, 0] = jnp.sum(log_z - true_logit) * (1.0 / B)

        # ---- pred = argmax(logits) (first max on ties) ----------------------
        is_max = logits >= m
        pred = jnp.min(jnp.where(is_max, lane, Lp), axis=-1, keepdims=True)
        pred_ref[...] = pred.astype(jnp.int32)

    return kernel


# ----------------------------------------------------------------------------
# One-time parameter preparation (no per-forward transpose / cast / pad)
# ----------------------------------------------------------------------------
def prepare_params(raw):
    emb, w, b = raw["emb"], raw["cls_w"], raw["cls_b"]
    V, H = emb.shape
    L = w.shape[0]
    Vp = _round_up(V, 128)                       # lane-dense one-hot contraction
    Lp = _round_up(L, 128)                       # lane-dense logits / prob
    emb_p = jnp.zeros((Vp, H), jnp.bfloat16).at[:V, :].set(emb.astype(jnp.bfloat16))
    wt_p = jnp.zeros((H, Lp), jnp.bfloat16).at[:, :L].set(w.T.astype(jnp.bfloat16))
    b_p = jnp.zeros((1, Lp), jnp.float32).at[:, :L].set(b.astype(jnp.float32))
    return {"emb": emb_p, "cls_wt": wt_p, "cls_b": b_p}


# ----------------------------------------------------------------------------
# Forward wrapper (single pallas_call; only trivial int reshapes remain in JAX)
# ----------------------------------------------------------------------------
def my_model_forward(tokens, mask, labels, prep, *, num_labels):
    B, S = tokens.shape
    BS = B * S
    Vp, H = prep["emb"].shape
    Lp = prep["cls_wt"].shape[1]

    tok2 = tokens.reshape(BS, 1).astype(jnp.int32)
    mask2 = mask.reshape(1, BS).astype(jnp.float32)
    y2 = labels.reshape(B, 1).astype(jnp.int32)

    loss2d, prob_p, pred2d = pl.pallas_call(
        make_fused_kernel(B, S, num_labels),
        out_shape=(
            jax.ShapeDtypeStruct((1, 1), jnp.float32),    # loss (scalar)
            jax.ShapeDtypeStruct((B, Lp), jnp.float32),   # prob (lane-dense)
            jax.ShapeDtypeStruct((B, 1), jnp.int32),      # pred
        ),
        in_specs=[
            pl.BlockSpec(memory_space=pltpu.MemorySpace.VMEM),  # tokens [BS,1]
            pl.BlockSpec(memory_space=pltpu.MemorySpace.VMEM),  # mask   [1,BS]
            pl.BlockSpec(memory_space=pltpu.MemorySpace.VMEM),  # emb    [Vp,H] bf16
            pl.BlockSpec(memory_space=pltpu.MemorySpace.VMEM),  # W^T    [H,Lp] bf16
            pl.BlockSpec(memory_space=pltpu.MemorySpace.VMEM),  # bias   [1,Lp]
            pl.BlockSpec(memory_space=pltpu.MemorySpace.VMEM),  # labels [B,1]
        ],
        out_specs=(
            pl.BlockSpec(memory_space=pltpu.MemorySpace.SMEM),  # scalar loss
            pl.BlockSpec(memory_space=pltpu.MemorySpace.VMEM),
            pl.BlockSpec(memory_space=pltpu.MemorySpace.VMEM),
        ),
        # NOTE: at realistic (BERT-scale) batches, add a grid over B with
        # dimension_semantics=("parallel",) so v7x's two TensorCores split rows
        # while W^T stays resident; at B=4 a grid is pure overhead.
    )(tok2, mask2, prep["emb"], prep["cls_wt"], prep["cls_b"], y2)

    return loss2d[0, 0], prob_p[:, :num_labels], pred2d[:, 0]


if __name__ == "__main__":
    B, S, H, L, VOCAB = 4, 8, 768, 32, 128   # hidden=768 fixed by the module

    key = jax.random.PRNGKey(0)
    k_emb, k_w, k_b, k_tok, k_len, k_lab = jax.random.split(key, 6)

    params = {
        "emb":   jax.random.normal(k_emb, (VOCAB, H), jnp.float32) * 0.02,
        "cls_w": jax.random.normal(k_w, (L, H), jnp.float32) * 0.02,  # nn.Linear(768, L).weight
        "cls_b": jax.random.normal(k_b, (L,), jnp.float32) * 0.02,    # nn.Linear(768, L).bias
    }
    prep = prepare_params(params)            # one-time: transpose/pad/bf16-cast

    tokens = jax.random.randint(k_tok, (B, S), 0, VOCAB, jnp.int32)
    lengths = jax.random.randint(k_len, (B, 1), 1, S + 1, jnp.int32)
    mask = (jnp.arange(S)[None, :] < lengths).astype(jnp.int32)       # attention mask
    labels = jax.random.randint(k_lab, (B,), 0, L, jnp.int32)

    fwd = jax.jit(my_model_forward, static_argnames=("num_labels",))
    loss, prob, pred = fwd(tokens, mask, labels, prep, num_labels=L)
    jax.block_until_ready((loss, prob, pred))

    # ---- pure-JAX reference (same bf16 quantization of emb / weight) --------
    emb_f = prep["emb"].astype(jnp.float32)[:VOCAB]                   # [V, H]
    emb_seq = emb_f[tokens]                                           # [B, S, H]
    mf = mask.astype(jnp.float32)[..., None]
    pooled_ref = (emb_seq * mf).sum(1) / jnp.maximum(mf.sum(1), 1e-6)
    w_f = prep["cls_wt"].astype(jnp.float32)[:, :L]                   # [H, L]
    logits_ref = pooled_ref.astype(jnp.bfloat16).astype(jnp.float32) @ w_f + params["cls_b"]
    prob_ref = jax.nn.softmax(logits_ref, axis=-1)
    nll_ref = jax.nn.logsumexp(logits_ref, axis=-1) - jnp.take_along_axis(
        logits_ref, labels[:, None], axis=-1)[:, 0]
    loss_ref = jnp.mean(nll_ref)

    # sanity checks
    assert bool(jnp.isfinite(loss))
    assert bool(jnp.allclose(prob.sum(-1), 1.0, atol=5e-3))           # approx recip
    assert bool(jnp.all(pred == jnp.argmax(prob, axis=-1)))
    assert bool(jnp.allclose(loss, loss_ref, rtol=3e-3, atol=3e-3))
    assert bool(jnp.allclose(prob, prob_ref, atol=5e-3))

    print("KERNEL_OK")
</pallas_src>

<mosaic_0001>
module attributes {stable_mosaic.version = 11 : i64} {
  func.func @kernel(%arg0: memref<32x1xi32, #tpu.memory_space<vmem>>, %arg1: memref<1x32xf32, #tpu.memory_space<vmem>>, %arg2: memref<128x768xbf16, #tpu.memory_space<vmem>>, %arg3: memref<768x128xbf16, #tpu.memory_space<vmem>>, %arg4: memref<1x128xf32, #tpu.memory_space<vmem>>, %arg5: memref<4x1xi32, #tpu.memory_space<vmem>>, %arg6: memref<1x1xf32, #tpu.memory_space<smem>>, %arg7: memref<4x128xf32, #tpu.memory_space<vmem>>, %arg8: memref<4x1xi32, #tpu.memory_space<vmem>>) attributes {dimension_semantics = [], scalar_prefetch = 0 : i64, scratch_operands = 0 : i64, tpu.core_type = #tpu.core_type<tc>} {
    %c0 = arith.constant 0 : index
    %c0_0 = arith.constant 0 : index
    %0 = vector.load %arg0[%c0, %c0_0] : memref<32x1xi32, #tpu.memory_space<vmem>>, vector<32x1xi32>
    %1 = tpu.iota {dimensions = array<i32: 1>} : vector<32x128xi32>
    %2 = vector.broadcast %0 : vector<32x1xi32> to vector<32x128xi32>
    %3 = arith.cmpi eq, %1, %2 : vector<32x128xi32>
    %4 = arith.extui %3 : vector<32x128xi1> to vector<32x128xi32>
    %5 = arith.sitofp %4 : vector<32x128xi32> to vector<32x128xf32>
    %6 = arith.truncf %5 : vector<32x128xf32> to vector<32x128xbf16>
    %c0_1 = arith.constant 0 : index
    %c0_2 = arith.constant 0 : index
    %7 = vector.load %arg2[%c0_1, %c0_2] : memref<128x768xbf16, #tpu.memory_space<vmem>>, vector<128x768xbf16>
    %cst = arith.constant dense<0.000000e+00> : vector<32x768xf32>
    %8 = tpu.matmul %6, %7, %cst {dimension_numbers = #tpu.dot_dimension_numbers<[1], [0], [0], [1], [0, 0, 1, 1], [], []>} : vector<32x128xbf16>, vector<128x768xbf16>, vector<32x768xf32> -> vector<32x768xf32>
    %9 = arith.truncf %8 : vector<32x768xf32> to vector<32x768xbf16>
    %10 = tpu.iota {dimensions = array<i32: 0>} : vector<4x32xi32>
    %11 = tpu.iota {dimensions = array<i32: 1>} : vector<4x32xi32>
    %c8_i32 = arith.constant 8 : i32
    %12 = vector.broadcast %c8_i32 : i32 to vector<4x32xi32>
    %13 = arith.muli %10, %12 : vector<4x32xi32>
    %14 = arith.cmpi sge, %11, %13 : vector<4x32xi32>
    %c1_i32 = arith.constant 1 : i32
    %15 = vector.broadcast %c1_i32 : i32 to vector<4x32xi32>
    %16 = arith.addi %10, %15 : vector<4x32xi32>
    %c8_i32_3 = arith.constant 8 : i32
    %17 = vector.broadcast %c8_i32_3 : i32 to vector<4x32xi32>
    %18 = arith.muli %16, %17 : vector<4x32xi32>
    %19 = arith.cmpi slt, %11, %18 : vector<4x32xi32>
    %20 = arith.andi %14, %19 : vector<4x32xi1>
    %c0_4 = arith.constant 0 : index
    %c0_5 = arith.constant 0 : index
    %21 = vector.load %arg1[%c0_4, %c0_5] : memref<1x32xf32, #tpu.memory_space<vmem>>, vector<1x32xf32>
    %cst_6 = arith.constant 0.000000e+00 : f32
    %22 = vector.shape_cast %21 : vector<1x32xf32> to vector<1x32xf32>
    %23 = vector.broadcast %22 : vector<1x32xf32> to vector<4x32xf32>
    %24 = vector.broadcast %cst_6 : f32 to vector<4x32xf32>
    %25 = arith.select %20, %23, %24 : vector<4x32xi1>, vector<4x32xf32>
    %cst_7 = arith.constant dense<0.000000e+00> : vector<4xf32>
    %26 = vector.multi_reduction <add>, %25, %cst_7 [1] : vector<4x32xf32> to vector<4xf32>
    %27 = vector.shape_cast %26 : vector<4xf32> to vector<4x1xf32>
    %cst_8 = arith.constant 9.99999997E-7 : f32
    %28 = vector.broadcast %cst_8 : f32 to vector<4x1xf32>
    %29 = arith.maximumf %27, %28 : vector<4x1xf32>
    %30 = arith.truncf %25 : vector<4x32xf32> to vector<4x32xbf16>
    %cst_9 = arith.constant dense<0.000000e+00> : vector<4x768xf32>
    %31 = tpu.matmul %30, %9, %cst_9 {dimension_numbers = #tpu.dot_dimension_numbers<[1], [0], [0], [1], [0, 0, 1, 1], [], []>} : vector<4x32xbf16>, vector<32x768xbf16>, vector<4x768xf32> -> vector<4x768xf32>
    %32 = tpu.reciprocal %29 : vector<4x1xf32> -> vector<4x1xf32>
    %33 = vector.broadcast %32 : vector<4x1xf32> to vector<4x768xf32>
    %34 = arith.mulf %31, %33 : vector<4x768xf32>
    %35 = arith.truncf %34 : vector<4x768xf32> to vector<4x768xbf16>
    %c0_10 = arith.constant 0 : index
    %c0_11 = arith.constant 0 : index
    %36 = vector.load %arg3[%c0_10, %c0_11] : memref<768x128xbf16, #tpu.memory_space<vmem>>, vector<768x128xbf16>
    %cst_12 = arith.constant dense<0.000000e+00> : vector<4x128xf32>
    %37 = tpu.matmul %35, %36, %cst_12 {dimension_numbers = #tpu.dot_dimension_numbers<[1], [0], [0], [1], [0, 0, 1, 1], [], []>} : vector<4x768xbf16>, vector<768x128xbf16>, vector<4x128xf32> -> vector<4x128xf32>
    %c0_13 = arith.constant 0 : index
    %c0_14 = arith.constant 0 : index
    %38 = vector.load %arg4[%c0_13, %c0_14] : memref<1x128xf32, #tpu.memory_space<vmem>>, vector<1x128xf32>
    %39 = vector.broadcast %38 : vector<1x128xf32> to vector<4x128xf32>
    %40 = arith.addf %37, %39 : vector<4x128xf32>
    %41 = tpu.iota {dimensions = array<i32: 1>} : vector<4x128xi32>
    %c32_i32 = arith.constant 32 : i32
    %42 = vector.broadcast %c32_i32 : i32 to vector<4x128xi32>
    %43 = arith.cmpi slt, %41, %42 : vector<4x128xi32>
    %cst_15 = arith.constant 0xFF800000 : f32
    %44 = vector.broadcast %cst_15 : f32 to vector<4x128xf32>
    %45 = arith.select %43, %40, %44 : vector<4x128xi1>, vector<4x128xf32>
    %cst_16 = arith.constant dense<0xFF800000> : vector<4xf32>
    %46 = vector.multi_reduction <maximumf>, %45, %cst_16 [1] : vector<4x128xf32> to vector<4xf32>
    %47 = vector.shape_cast %46 : vector<4xf32> to vector<4x1xf32>
    %48 = vector.broadcast %47 : vector<4x1xf32> to vector<4x128xf32>
    %49 = arith.subf %45, %48 : vector<4x128xf32>
    %50 = math.exp %49 : vector<4x128xf32>
    %cst_17 = arith.constant dense<0.000000e+00> : vector<4xf32>
    %51 = vector.multi_reduction <add>, %50, %cst_17 [1] : vector<4x128xf32> to vector<4xf32>
    %52 = vector.shape_cast %51 : vector<4xf32> to vector<4x1xf32>
    %53 = tpu.reciprocal %52 {approx = true} : vector<4x1xf32> -> vector<4x1xf32>
    %54 = vector.broadcast %53 : vector<4x1xf32> to vector<4x128xf32>
    %55 = arith.mulf %50, %54 : vector<4x128xf32>
    %c0_18 = arith.constant 0 : index
    %c0_19 = arith.constant 0 : index
    %56 = vector.load %arg7[%c0_18, %c0_19] : memref<4x128xf32, #tpu.memory_space<vmem>>, vector<4x128xf32>
    tpu.vector_store %arg7[%c0_18, %c0_19], %55 {strides = array<i32>} : memref<4x128xf32, #tpu.memory_space<vmem>>, vector<4x128xf32>,
    %c0_20 = arith.constant 0 : index
    %c0_21 = arith.constant 0 : index
    %57 = vector.load %arg5[%c0_20, %c0_21] : memref<4x1xi32, #tpu.memory_space<vmem>>, vector<4x1xi32>
    %58 = math.log %52 : vector<4x1xf32>
    %59 = arith.addf %47, %58 : vector<4x1xf32>
    %60 = vector.broadcast %57 : vector<4x1xi32> to vector<4x128xi32>
    %61 = arith.cmpi eq, %41, %60 : vector<4x128xi32>
    %cst_22 = arith.constant 0.000000e+00 : f32
    %62 = vector.broadcast %cst_22 : f32 to vector<4x128xf32>
    %63 = arith.select %61, %45, %62 : vector<4x128xi1>, vector<4x128xf32>
    %cst_23 = arith.constant dense<0.000000e+00> : vector<4xf32>
    %64 = vector.multi_reduction <add>, %63, %cst_23 [1] : vector<4x128xf32> to vector<4xf32>
    %65 = vector.shape_cast %64 : vector<4xf32> to vector<4x1xf32>
    %66 = arith.subf %59, %65 : vector<4x1xf32>
    %67 = vector.shape_cast %66 : vector<4x1xf32> to vector<1x4x1xf32>
    %cst_24 = arith.constant dense<0.000000e+00> : vector<1xf32>
    %68 = vector.multi_reduction <add>, %67, %cst_24 [1, 2] : vector<1x4x1xf32> to vector<1xf32>
    %69 = vector.shape_cast %68 : vector<1xf32> to vector<1x1x1xf32>
    %70 = vector.extract %69[0, 0, 0] : f32 from vector<1x1x1xf32>
    %cst_25 = arith.constant 2.500000e-01 : f32
    %71 = arith.mulf %70, %cst_25 : f32
    %c0_26 = arith.constant 0 : index
    %c0_27 = arith.constant 0 : index
    %72 = memref.load %arg6[%c0_26, %c0_27] : memref<1x1xf32, #tpu.memory_space<smem>>
    memref.store %71, %arg6[%c0_26, %c0_27] : memref<1x1xf32, #tpu.memory_space<smem>>
    %73 = vector.broadcast %47 : vector<4x1xf32> to vector<4x128xf32>
    %74 = arith.cmpf oge, %45, %73 : vector<4x128xf32>
    %c128_i32 = arith.constant 128 : i32
    %75 = vector.broadcast %c128_i32 : i32 to vector<4x128xi32>
    %76 = arith.select %74, %41, %75 : vector<4x128xi1>, vector<4x128xi32>
    %cst_28 = arith.constant dense<2147483647> : vector<4xi32>
    %77 = vector.multi_reduction <minsi>, %76, %cst_28 [1] : vector<4x128xi32> to vector<4xi32>
    %78 = vector.shape_cast %77 : vector<4xi32> to vector<4x1xi32>
    %c0_29 = arith.constant 0 : index
    %c0_30 = arith.constant 0 : index
    %79 = vector.load %arg8[%c0_29, %c0_30] : memref<4x1xi32, #tpu.memory_space<vmem>>, vector<4x1xi32>
    tpu.vector_store %arg8[%c0_29, %c0_30], %78 {strides = array<i32>} : memref<4x1xi32, #tpu.memory_space<vmem>>, vector<4x1xi32>,
    return
  }
}

</mosaic_0001>

<llo_original>
// kernel: my_model_forward.1
$region0: #{my_model_forward.1}
  #allocation0 [shape = 'u32[]', space=smem, size = 0x4, offset = 0x4, fixed_abs, tag = 'smem constant byte address 0x4 - core index']
  #allocation1 [shape = 'u32[144,128]{1,0:T(1,128)}', space=vmem, size = 0x12000, scoped, tag = 'internal scratch']
  %s0 = inlined_call_operand.vmem [shape: s32[32,1], index: 0, kind: input, shape index: {}]
  %s1 = inlined_call_operand.vmem [shape: f32[1,32], index: 1, kind: input, shape index: {}]
  %s2 = inlined_call_operand.hbm [shape: bf16[128,768], index: 2, kind: input, shape index: {}]
  %s3 = inlined_call_operand.hbm [shape: bf16[768,128], index: 3, kind: input, shape index: {}]
  %s4 = inlined_call_operand.vmem [shape: f32[1,128], index: 4, kind: input, shape index: {}]
  %s5 = inlined_call_operand.vmem [shape: s32[4,1], index: 5, kind: input, shape index: {}]
  %s6 = inlined_call_operand.hbm [shape: f32[1,1], index: 6, kind: output, shape index: {0}]
  %s7 = inlined_call_operand.hbm [shape: f32[4,128], index: 7, kind: output, shape index: {1}]
  %s8 = inlined_call_operand.vmem [shape: s32[4,1], index: 8, kind: output, shape index: {2}]
  %9 = xla_tuple %s6, %s7, %s8
  %s10 = sld [smem:[#allocation0]]
  $region58: #{my_model_forward.1} parent=0
    _
  %s12 = ssub.s32 1, %s10
  %s13 = scalar_select 0, %s12, %s10
  $region1: #{my_model_forward.1} parent=0
    #allocation2 [shape = 'u8[196608]{0}', space=vmem, size = 0x30000, scoped, tag = 'input window, operand 2, single buffered']
    #allocation3 [shape = 's32[1]{0}', space=sflag, size = 0x4, scoped, tag = 'scoped memory for my_model_forward.1']
    #allocation4 [shape = 's32[1]{0}', space=sflag, size = 0x4, scoped, tag = 'scoped memory for my_model_forward.1']
    #allocation5 [shape = 's32[1]{0}', space=sflag, size = 0x4, scoped, tag = 'scoped memory for my_model_forward.1']
    #allocation6 [shape = 'u8[196608]{0}', space=vmem, size = 0x30000, scoped, tag = 'input window, operand 3, single buffered']
    #allocation7 [shape = 's32[1]{0}', space=sflag, size = 0x4, scoped, tag = 'scoped memory for my_model_forward.1']
    #allocation8 [shape = 'u8[512]{0}', space=smem, size = 0x200, scoped, tag = 'output window, operand 0, single buffered']
    #allocation9 [shape = 'u8[2048]{0}', space=vmem, size = 0x800, scoped, tag = 'output window, operand 1, single buffered']
    %14 = vsyncpa [#allocation3], 0
    %15 = vsyncpa [#allocation7], 0
    %16 = vsyncpa [#allocation5], 0
    %17 = vsyncpa [#allocation4], 0
    // Predicated region
    $region2: #{my_model_forward.1} parent=1 // pred_check
      _
    $region3: #{my_model_forward.1} parent=1 // pred_check_branch
      %19 = sbr.rel (0) target = $region5
    $region4: #{my_model_forward.1} parent=1 // pred_region
      _
    $region5: #{my_model_forward.1} parent=1 // pred_fallthru
      _
    // Predicated region
    $region6: #{my_model_forward.1} parent=1 // pred_check
      _
    $region7: #{my_model_forward.1} parent=1 // pred_check_branch
      %21 = sbr.rel (0) target = $region9
    $region8: #{my_model_forward.1} parent=1 // pred_region
      _
    $region9: #{my_model_forward.1} parent=1 // pred_fallthru
      _
    // Predicated region
    $region10: #{my_model_forward.1} parent=1 // pred_check
      _
    $region11: #{my_model_forward.1} parent=1 // pred_check_branch
      %23 = sbr.rel (0) target = $region13
    $region12: #{my_model_forward.1} parent=1 // pred_region
      %s25 = ssub.s32 6144, 6144
      %26 = vsyncadd [#allocation3], %s25
      %s27 = sshll.u32 [#allocation2], 4
      %s28 = int_to_ptr.vmem [resolvable:$true] %s27
      %33 = dma.hbm_to_vmem [thread:$0]  %s2, 6144, %s28, [#allocation3], 384, 384, 24
    $region13: #{my_model_forward.1} parent=1 // pred_fallthru
      _
    // Predicated region
    $region14: #{my_model_forward.1} parent=1 // pred_check
      _
    $region15: #{my_model_forward.1} parent=1 // pred_check_branch
      %35 = sbr.rel (0) target = $region17
    $region16: #{my_model_forward.1} parent=1 // pred_region
      %s37 = ssub.s32 6144, 6144
      %38 = vsyncadd [#allocation7], %s37
      %s39 = sshll.u32 [#allocation6], 4
      %s40 = int_to_ptr.vmem [resolvable:$true] %s39
      %45 = dma.hbm_to_vmem [thread:$0]  %s3, 6144, %s40, [#allocation7], 64, 64, 4
    $region17: #{my_model_forward.1} parent=1 // pred_fallthru
      _
    // Predicated region
    $region18: #{my_model_forward.1} parent=1 // pred_check
      _
    $region19: #{my_model_forward.1} parent=1 // pred_check_branch
      %47 = sbr.rel (0) target = $region21
    $region20: #{my_model_forward.1} parent=1 // pred_region
      _
    $region21: #{my_model_forward.1} parent=1 // pred_fallthru
      _
    // Predicated region
    $region22: #{my_model_forward.1} parent=1 // pred_check
      _
    $region23: #{my_model_forward.1} parent=1 // pred_check_branch
      %49 = sbr.rel (0) target = $region25
    $region24: #{my_model_forward.1} parent=1 // pred_region
      _
    $region25: #{my_model_forward.1} parent=1 // pred_fallthru
      _
    // Predicated region
    $region26: #{my_model_forward.1} parent=1 // pred_check
      _
    $region27: #{my_model_forward.1} parent=1 // pred_check_branch
      %51 = sbr.rel (0) target = $region29
    $region28: #{my_model_forward.1} parent=1 // pred_region
      %52 = dma.done [#allocation3], 6144
    $region29: #{my_model_forward.1} parent=1 // pred_fallthru
      _
    // Predicated region
    $region30: #{my_model_forward.1} parent=1 // pred_check
      _
    $region31: #{my_model_forward.1} parent=1 // pred_check_branch
      %54 = sbr.rel (0) target = $region33
    $region32: #{my_model_forward.1} parent=1 // pred_region
      %55 = dma.done [#allocation7], 6144
    $region33: #{my_model_forward.1} parent=1 // pred_fallthru
      _
    %v57 = vld [vmem:[%s0] sm:$0xff]
    %v58 = vld [vmem:[%s0 + $0x8] sm:$0xff]
    %v59 = vld [vmem:[%s0 + $0x10] sm:$0xff]
    %v60 = vld [vmem:[%s0 + $0x18] sm:$0xff]
    %v61 = vlaneseq
    %v62 = vand.u32 %v61, 127
    %63 = vset.pattern.permute.xlu0 0
    %64 = vperm.xlu0 %63, %v57
    %v65 = vpop.permute.xlu0 %64
    %66 = vset.pattern.permute.xlu0 0
    %67 = vperm.xlu0 %66, %v58
    %v68 = vpop.permute.xlu0 %67
    %69 = vset.pattern.permute.xlu0 0
    %70 = vperm.xlu0 %69, %v59
    %v71 = vpop.permute.xlu0 %70
    %72 = vset.pattern.permute.xlu0 0
    %73 = vperm.xlu0 %72, %v60
    %v74 = vpop.permute.xlu0 %73
    %vm75 = vcmp.eq.s32.totalorder %v62, %v65
    %vm76 = vcmp.eq.s32.totalorder %v62, %v68
    %vm77 = vcmp.eq.s32.totalorder %v62, %v71
    %vm78 = vcmp.eq.s32.totalorder %v62, %v74
    %v79 = vsel %vm75, 1, 0
    %v80 = vsel %vm76, 1, 0
    %v81 = vsel %vm77, 1, 0
    %v82 = vsel %vm78, 1, 0
    %v83 = vcvt.s32.f32 %v79
    %v84 = vcvt.s32.f32 %v80
    %v85 = vcvt.s32.f32 %v81
    %v86 = vcvt.s32.f32 %v82
    %v87 = vpack.c.bf16 %v84, %v83
    %v88 = vpack.c.bf16 %v86, %v85
    %v89 = vld [vmem:[#allocation2] sm:$0xff]
    %v90 = vld [vmem:[#allocation2 + $0x8] sm:$0xff]
    %v91 = vld [vmem:[#allocation2 + $0x10] sm:$0xff]
    %v92 = vld [vmem:[#allocation2 + $0x18] sm:$0xff]
    %v93 = vld [vmem:[#allocation2 + $0x20] sm:$0xff]
    %v94 = vld [vmem:[#allocation2 + $0x28] sm:$0xff]
    %v95 = vld [vmem:[#allocation2 + $0x30] sm:$0xff]
    %v96 = vld [vmem:[#allocation2 + $0x38] sm:$0xff]
    %v97 = vld [vmem:[#allocation2 + $0x40] sm:$0xff]
    %v98 = vld [vmem:[#allocation2 + $0x48] sm:$0xff]
    %v99 = vld [vmem:[#allocation2 + $0x50] sm:$0xff]
    %v100 = vld [vmem:[#allocation2 + $0x58] sm:$0xff]
    %v101 = vld [vmem:[#allocation2 + $0x60] sm:$0xff]
    %v102 = vld [vmem:[#allocation2 + $0x68] sm:$0xff]
    %v103 = vld [vmem:[#allocation2 + $0x70] sm:$0xff]
    %v104 = vld [vmem:[#allocation2 + $0x78] sm:$0xff]
    %v105 = vld [vmem:[#allocation2 + $0x80] sm:$0xff]
    %v106 = vld [vmem:[#allocation2 + $0x88] sm:$0xff]
    %v107 = vld [vmem:[#allocation2 + $0x90] sm:$0xff]
    %v108 = vld [vmem:[#allocation2 + $0x98] sm:$0xff]
    %v109 = vld [vmem:[#allocation2 + $0xa0] sm:$0xff]
    %v110 = vld [vmem:[#allocation2 + $0xa8] sm:$0xff]
    %v111 = vld [vmem:[#allocation2 + $0xb0] sm:$0xff]
    %v112 = vld [vmem:[#allocation2 + $0xb8] sm:$0xff]
    %v113 = vld [vmem:[#allocation2 + $0xc0] sm:$0xff]
    %v114 = vld [vmem:[#allocation2 + $0xc8] sm:$0xff]
    %v115 = vld [vmem:[#allocation2 + $0xd0] sm:$0xff]
    %v116 = vld [vmem:[#allocation2 + $0xd8] sm:$0xff]
    %v117 = vld [vmem:[#allocation2 + $0xe0] sm:$0xff]
    %v118 = vld [vmem:[#allocation2 + $0xe8] sm:$0xff]
    %v119 = vld [vmem:[#allocation2 + $0xf0] sm:$0xff]
    %v120 = vld [vmem:[#allocation2 + $0xf8] sm:$0xff]
    %v121 = vld [vmem:[#allocation2 + $0x100] sm:$0xff]
    %v122 = vld [vmem:[#allocation2 + $0x108] sm:$0xff]
    %v123 = vld [vmem:[#allocation2 + $0x110] sm:$0xff]
    %v124 = vld [vmem:[#allocation2 + $0x118] sm:$0xff]
    %v125 = vld [vmem:[#allocation2 + $0x120] sm:$0xff]
    %v126 = vld [vmem:[#allocation2 + $0x128] sm:$0xff]
    %v127 = vld [vmem:[#allocation2 + $0x130] sm:$0xff]
    %v128 = vld [vmem:[#allocation2 + $0x138] sm:$0xff]
    %v129 = vld [vmem:[#allocation2 + $0x140] sm:$0xff]
    %v130 = vld [vmem:[#allocation2 + $0x148] sm:$0xff]
    %v131 = vld [vmem:[#allocation2 + $0x150] sm:$0xff]
    %v132 = vld [vmem:[#allocation2 + $0x158] sm:$0xff]
    %v133 = vld [vmem:[#allocation2 + $0x160] sm:$0xff]
    %v134 = vld [vmem:[#allocation2 + $0x168] sm:$0xff]
    %v135 = vld [vmem:[#allocation2 + $0x170] sm:$0xff]
    %v136 = vld [vmem:[#allocation2 + $0x178] sm:$0xff]
    %v185 = vunpack.c.l.b16 %v89
    %v186 = vunpack.c.h.b16 %v89
    %v187 = vunpack.c.l.b16 %v90
    %v188 = vunpack.c.h.b16 %v90
    %v189 = vunpack.c.l.b16 %v91
    %v190 = vunpack.c.h.b16 %v91
    %v191 = vunpack.c.l.b16 %v92
    %v192 = vunpack.c.h.b16 %v92
    %v193 = vunpack.c.l.b16 %v93
    %v194 = vunpack.c.h.b16 %v93
    %v195 = vunpack.c.l.b16 %v94
    %v196 = vunpack.c.h.b16 %v94
    %v197 = vunpack.c.l.b16 %v95
    %v198 = vunpack.c.h.b16 %v95
    %v199 = vunpack.c.l.b16 %v96
    %v200 = vunpack.c.h.b16 %v96
    %v201 = vunpack.c.l.b16 %v97
    %v202 = vunpack.c.h.b16 %v97
    %v203 = vunpack.c.l.b16 %v98
    %v204 = vunpack.c.h.b16 %v98
    %v205 = vunpack.c.l.b16 %v99
    %v206 = vunpack.c.h.b16 %v99
    %v207 = vunpack.c.l.b16 %v100
    %v208 = vunpack.c.h.b16 %v100
    %v209 = vunpack.c.l.b16 %v101
    %v210 = vunpack.c.h.b16 %v101
    %v211 = vunpack.c.l.b16 %v102
    %v212 = vunpack.c.h.b16 %v102
    %v213 = vunpack.c.l.b16 %v103
    %v214 = vunpack.c.h.b16 %v103
    %v215 = vunpack.c.l.b16 %v104
    %v216 = vunpack.c.h.b16 %v104
    %v217 = vunpack.c.l.b16 %v105
    %v218 = vunpack.c.h.b16 %v105
    %v219 = vunpack.c.l.b16 %v106
    %v220 = vunpack.c.h.b16 %v106
    %v221 = vunpack.c.l.b16 %v107
    %v222 = vunpack.c.h.b16 %v107
    %v223 = vunpack.c.l.b16 %v108
    %v224 = vunpack.c.h.b16 %v108
    %v225 = vunpack.c.l.b16 %v109
    %v226 = vunpack.c.h.b16 %v109
    %v227 = vunpack.c.l.b16 %v110
    %v228 = vunpack.c.h.b16 %v110
    %v229 = vunpack.c.l.b16 %v111
    %v230 = vunpack.c.h.b16 %v111
    %v231 = vunpack.c.l.b16 %v112
    %v232 = vunpack.c.h.b16 %v112
    %v233 = vunpack.c.l.b16 %v113
    %v234 = vunpack.c.h.b16 %v113
    %v235 = vunpack.c.l.b16 %v114
    %v236 = vunpack.c.h.b16 %v114
    %v237 = vunpack.c.l.b16 %v115
    %v238 = vunpack.c.h.b16 %v115
    %v239 = vunpack.c.l.b16 %v116
    %v240 = vunpack.c.h.b16 %v116
    %v241 = vunpack.c.l.b16 %v117
    %v242 = vunpack.c.h.b16 %v117
    %v243 = vunpack.c.l.b16 %v118
    %v244 = vunpack.c.h.b16 %v118
    %v245 = vunpack.c.l.b16 %v119
    %v246 = vunpack.c.h.b16 %v119
    %v247 = vunpack.c.l.b16 %v120
    %v248 = vunpack.c.h.b16 %v120
    %v249 = vunpack.c.l.b16 %v121
    %v250 = vunpack.c.h.b16 %v121
    %v251 = vunpack.c.l.b16 %v122
    %v252 = vunpack.c.h.b16 %v122
    %v253 = vunpack.c.l.b16 %v123
    %v254 = vunpack.c.h.b16 %v123
    %v255 = vunpack.c.l.b16 %v124
    %v256 = vunpack.c.h.b16 %v124
    %v257 = vunpack.c.l.b16 %v125
    %v258 = vunpack.c.h.b16 %v125
    %v259 = vunpack.c.l.b16 %v126
    %v260 = vunpack.c.h.b16 %v126
    %v261 = vunpack.c.l.b16 %v127
    %v262 = vunpack.c.h.b16 %v127
    %v263 = vunpack.c.l.b16 %v128
    %v264 = vunpack.c.h.b16 %v128
    %v265 = vunpack.c.l.b16 %v129
    %v266 = vunpack.c.h.b16 %v129
    %v267 = vunpack.c.l.b16 %v130
    %v268 = vunpack.c.h.b16 %v130
    %v269 = vunpack.c.l.b16 %v131
    %v270 = vunpack.c.h.b16 %v131
    %v271 = vunpack.c.l.b16 %v132
    %v272 = vunpack.c.h.b16 %v132
    %v273 = vunpack.c.l.b16 %v133
    %v274 = vunpack.c.h.b16 %v133
    %v275 = vunpack.c.l.b16 %v134
    %v276 = vunpack.c.h.b16 %v134
    %v277 = vunpack.c.l.b16 %v135
    %v278 = vunpack.c.h.b16 %v135
    %v279 = vunpack.c.l.b16 %v136
    %v280 = vunpack.c.h.b16 %v136
    %v281 = vpack.c.b16 %v191, %v185
    %v282 = vpack.c.b16 %v192, %v186
    %v283 = vpack.c.b16 %v193, %v187
    %v284 = vpack.c.b16 %v194, %v188
    %v285 = vpack.c.b16 %v195, %v189
    %v286 = vpack.c.b16 %v196, %v190
    %v287 = vpack.c.b16 %v203, %v197
    %v288 = vpack.c.b16 %v204, %v198
    %v289 = vpack.c.b16 %v205, %v199
    %v290 = vpack.c.b16 %v206, %v200
    %v291 = vpack.c.b16 %v207, %v201
    %v292 = vpack.c.b16 %v208, %v202
    %v293 = vpack.c.b16 %v215, %v209
    %v294 = vpack.c.b16 %v216, %v210
    %v295 = vpack.c.b16 %v217, %v211
    %v296 = vpack.c.b16 %v218, %v212
    %v297 = vpack.c.b16 %v219, %v213
    %v298 = vpack.c.b16 %v220, %v214
    %v299 = vpack.c.b16 %v227, %v221
    %v300 = vpack.c.b16 %v228, %v222
    %v301 = vpack.c.b16 %v229, %v223
    %v302 = vpack.c.b16 %v230, %v224
    %v303 = vpack.c.b16 %v231, %v225
    %v304 = vpack.c.b16 %v232, %v226
    %v305 = vpack.c.b16 %v239, %v233
    %v306 = vpack.c.b16 %v240, %v234
    %v307 = vpack.c.b16 %v241, %v235
    %v308 = vpack.c.b16 %v242, %v236
    %v309 = vpack.c.b16 %v243, %v237
    %v310 = vpack.c.b16 %v244, %v238
    %v311 = vpack.c.b16 %v251, %v245
    %v312 = vpack.c.b16 %v252, %v246
    %v313 = vpack.c.b16 %v253, %v247
    %v314 = vpack.c.b16 %v254, %v248
    %v315 = vpack.c.b16 %v255, %v249
    %v316 = vpack.c.b16 %v256, %v250
    %v317 = vpack.c.b16 %v263, %v257
    %v318 = vpack.c.b16 %v264, %v258
    %v319 = vpack.c.b16 %v265, %v259
    %v320 = vpack.c.b16 %v266, %v260
    %v321 = vpack.c.b16 %v267, %v261
    %v322 = vpack.c.b16 %v268, %v262
    %v323 = vpack.c.b16 %v275, %v269
    %v324 = vpack.c.b16 %v276, %v270
    %v325 = vpack.c.b16 %v277, %v271
    %v326 = vpack.c.b16 %v278, %v272
    %v327 = vpack.c.b16 %v279, %v273
    %v328 = vpack.c.b16 %v280, %v274
    %377 = vmatprep.subr.bf16.mxu0 %v324
    %378 = vmatpush1.bf16.msra.mxu0 %v323
    %379 = vmatprep.subr.bf16.mxu0 %v318
    %380 = vmatpush1.bf16.msra.mxu0 %v317
    %381 = vmatprep.subr.bf16.mxu0 %v312
    %382 = vmatpush1.bf16.msra.mxu0 %v311
    %383 = vmatprep.subr.bf16.mxu0 %v306
    %384 = vmatpush1.bf16.msra.mxu0 %v305
    %385 = vmatprep.subr.bf16.mxu0 %v300
    %386 = vmatpush1.bf16.msra.mxu0 %v299
    %387 = vmatprep.subr.bf16.mxu0 %v294
    %388 = vmatpush1.bf16.msra.mxu0 %v293
    %389 = vmatprep.subr.bf16.mxu0 %v288
    %390 = vmatpush1.bf16.msra.mxu0 %v287
    %391 = vmatprep.subr.bf16.mxu0 %v282
    %392 = vmatpush1.bf16.msra.mxu0 %v281
    %393 = vmatprep.subr.bf16.mxu0 0
    %394 = vmatpush2.bf16.msra.mxu0 0
    %395 = vmatprep.subr.bf16.mxu0 0
    %396 = vmatpush2.bf16.msra.mxu0 0
    %397 = vmatprep.subr.bf16.mxu0 0
    %398 = vmatpush2.bf16.msra.mxu0 0
    %399 = vmatprep.subr.bf16.mxu0 0
    %400 = vmatpush2.bf16.msra.mxu0 0
    %401 = vmatprep.subr.bf16.mxu0 0
    %402 = vmatpush2.bf16.msra.mxu0 0
    %403 = vmatprep.subr.bf16.mxu0 0
    %404 = vmatpush2.bf16.msra.mxu0 0
    %405 = vmatprep.subr.bf16.mxu0 0
    %406 = vmatpush2.bf16.msra.mxu0 0
    %407 = vmatprep.subr.bf16.mxu0 0
    %408 = vmatpush2.bf16.msra.mxu0 0
    %409 = vmatprep.mubr.bf16.mxu0 0
    %410 = vmatmul.mubr.bf16.gmra.mxu0 %v87
    %v411 = vpop.f32.mrf.mxu0
    %v412 = vadd.f32 0.0, %v411
    %v413 = vpop.f32.mrf.mxu0
    %v414 = vadd.f32 0.0, %v413
    %v415 = vpop.f32.mrf.mxu0
    %v416 = vadd.f32 0.0, %v415
    %v417 = vpop.f32.mrf.mxu0
    %v418 = vadd.f32 0.0, %v417
    %419 = vmatprep.mubr.bf16.mxu0 0
    %420 = vmatmul.mubr.bf16.gmra.mxu0 %v88
    %v421 = vpop.f32.mrf.mxu0
    %v422 = vadd.f32 0.0, %v421
    %v423 = vpop.f32.mrf.mxu0
    %v424 = vadd.f32 0.0, %v423
    %v425 = vpop.f32.mrf.mxu0
    %v426 = vadd.f32 0.0, %v425
    %v427 = vpop.f32.mrf.mxu0
    %v428 = vadd.f32 0.0, %v427
    %429 = vdwg.mxu0
    %430 = vmatprep.subr.bf16.mxu0 %v326
    %431 = vmatpush1.bf16.msra.mxu0 %v325
    %432 = vmatprep.subr.bf16.mxu0 %v320
    %433 = vmatpush1.bf16.msra.mxu0 %v319
    %434 = vmatprep.subr.bf16.mxu0 %v314
    %435 = vmatpush1.bf16.msra.mxu0 %v313
    %436 = vmatprep.subr.bf16.mxu0 %v308
    %437 = vmatpush1.bf16.msra.mxu0 %v307
    %438 = vmatprep.subr.bf16.mxu0 %v302
    %439 = vmatpush1.bf16.msra.mxu0 %v301
    %440 = vmatprep.subr.bf16.mxu0 %v296
    %441 = vmatpush1.bf16.msra.mxu0 %v295
    %442 = vmatprep.subr.bf16.mxu0 %v290
    %443 = vmatpush1.bf16.msra.mxu0 %v289
    %444 = vmatprep.subr.bf16.mxu0 %v284
    %445 = vmatpush1.bf16.msra.mxu0 %v283
    %446 = vmatprep.subr.bf16.mxu0 0
    %447 = vmatpush2.bf16.msra.mxu0 0
    %448 = vmatprep.subr.bf16.mxu0 0
    %449 = vmatpush2.bf16.msra.mxu0 0
    %450 = vmatprep.subr.bf16.mxu0 0
    %451 = vmatpush2.bf16.msra.mxu0 0
    %452 = vmatprep.subr.bf16.mxu0 0
    %453 = vmatpush2.bf16.msra.mxu0 0
    %454 = vmatprep.subr.bf16.mxu0 0
    %455 = vmatpush2.bf16.msra.mxu0 0
    %456 = vmatprep.subr.bf16.mxu0 0
    %457 = vmatpush2.bf16.msra.mxu0 0
    %458 = vmatprep.subr.bf16.mxu0 0
    %459 = vmatpush2.bf16.msra.mxu0 0
    %460 = vmatprep.subr.bf16.mxu0 0
    %461 = vmatpush2.bf16.msra.mxu0 0
    %462 = vmatprep.mubr.bf16.mxu0 0
    %463 = vmatmul.mubr.bf16.gmra.mxu0 %v87
    %v464 = vpop.f32.mrf.mxu0
    %v465 = vadd.f32 0.0, %v464
    %v466 = vpop.f32.mrf.mxu0
    %v467 = vadd.f32 0.0, %v466
    %v468 = vpop.f32.mrf.mxu0
    %v469 = vadd.f32 0.0, %v468
    %v470 = vpop.f32.mrf.mxu0
    %v471 = vadd.f32 0.0, %v470
    %472 = vmatprep.mubr.bf16.mxu0 0
    %473 = vmatmul.mubr.bf16.gmra.mxu0 %v88
    %v474 = vpop.f32.mrf.mxu0
    %v475 = vadd.f32 0.0, %v474
    %v476 = vpop.f32.mrf.mxu0
    %v477 = vadd.f32 0.0, %v476
    %v478 = vpop.f32.mrf.mxu0
    %v479 = vadd.f32 0.0, %v478
    %v480 = vpop.f32.mrf.mxu0
    %v481 = vadd.f32 0.0, %v480
    %482 = vdwg.mxu0
    %483 = vmatprep.subr.bf16.mxu0 %v328
    %484 = vmatpush1.bf16.msra.mxu0 %v327
    %485 = vmatprep.subr.bf16.mxu0 %v322
    %486 = vmatpush1.bf16.msra.mxu0 %v321
    %487 = vmatprep.subr.bf16.mxu0 %v316
    %488 = vmatpush1.bf16.msra.mxu0 %v315
    %489 = vmatprep.subr.bf16.mxu0 %v310
    %490 = vmatpush1.bf16.msra.mxu0 %v309
    %491 = vmatprep.subr.bf16.mxu0 %v304
    %492 = vmatpush1.bf16.msra.mxu0 %v303
    %493 = vmatprep.subr.bf16.mxu0 %v298
    %494 = vmatpush1.bf16.msra.mxu0 %v297
    %495 = vmatprep.subr.bf16.mxu0 %v292
    %496 = vmatpush1.bf16.msra.mxu0 %v291
    %497 = vmatprep.subr.bf16.mxu0 %v286
    %498 = vmatpush1.bf16.msra.mxu0 %v285
    %499 = vmatprep.subr.bf16.mxu0 0
    %500 = vmatpush2.bf16.msra.mxu0 0
    %501 = vmatprep.subr.bf16.mxu0 0
    %502 = vmatpush2.bf16.msra.mxu0 0
    %503 = vmatprep.subr.bf16.mxu0 0
    %504 = vmatpush2.bf16.msra.mxu0 0
    %505 = vmatprep.subr.bf16.mxu0 0
    %506 = vmatpush2.bf16.msra.mxu0 0
    %507 = vmatprep.subr.bf16.mxu0 0
    %508 = vmatpush2.bf16.msra.mxu0 0
    %509 = vmatprep.subr.bf16.mxu0 0
    %510 = vmatpush2.bf16.msra.mxu0 0
    %511 = vmatprep.subr.bf16.mxu0 0
    %512 = vmatpush2.bf16.msra.mxu0 0
    %513 = vmatprep.subr.bf16.mxu0 0
    %514 = vmatpush2.bf16.msra.mxu0 0
    %515 = vmatprep.mubr.bf16.mxu0 0
    %516 = vmatmul.mubr.bf16.gmra.mxu0 %v87
    %v517 = vpop.f32.mrf.mxu0
    %v518 = vadd.f32 0.0, %v517
    %v519 = vpop.f32.mrf.mxu0
    %v520 = vadd.f32 0.0, %v519
    %v521 = vpop.f32.mrf.mxu0
    %v522 = vadd.f32 0.0, %v521
    %v523 = vpop.f32.mrf.mxu0
    %v524 = vadd.f32 0.0, %v523
    %525 = vmatprep.mubr.bf16.mxu0 0
    %526 = vmatmul.mubr.bf16.gmra.mxu0 %v88
    %v527 = vpop.f32.mrf.mxu0
    %v528 = vadd.f32 0.0, %v527
    %v529 = vpop.f32.mrf.mxu0
    %v530 = vadd.f32 0.0, %v529
    %v531 = vpop.f32.mrf.mxu0
    %v532 = vadd.f32 0.0, %v531
    %v533 = vpop.f32.mrf.mxu0
    %v534 = vadd.f32 0.0, %v533
    %535 = vdwg.mxu0
    %v536 = vpack.c.bf16 %v416, %v412
    %v537 = vpack.c.bf16 %v418, %v414
    %v538 = vpack.c.bf16 %v469, %v465
    %v539 = vpack.c.bf16 %v471, %v467
    %v540 = vpack.c.bf16 %v522, %v518
    %v541 = vpack.c.bf16 %v524, %v520
    %v542 = vpack.c.bf16 %v426, %v422
    %v543 = vpack.c.bf16 %v428, %v424
    %v544 = vpack.c.bf16 %v479, %v475
    %v545 = vpack.c.bf16 %v481, %v477
    %v546 = vpack.c.bf16 %v532, %v528
    %v547 = vpack.c.bf16 %v534, %v530
    %v548 = vlaneseq
    %v549 = vshrl.u32 %v548, 7
    %v550 = vmul.u32 %v549, 8
    %vm551 = vcmp.ge.s32.totalorder %v62, %v550
    %v552 = vadd.s32 %v549, 1
    %v553 = vmul.u32 %v552, 8
    %vm554 = vcmp.lt.s32.totalorder %v62, %v553
    %vm555 = vmand %vm551, %vm554
    %v556 = vld [vmem:[%s1] sm:$0x1]
    %v558 = vlaneseq
    %v559 = vshrl.u32 %v558, 7
    %v560 = vsub.s32 0, %v559
    %v561 = vrot.slane %v556, %v560
    %v563 = vsel %vm555, %v561, 0.0
    %vm564 = vcmask 257024
    %v565 = vsel %vm564, %v563, 0.0
    %566 = vadd.xlane.f32.xlu0 %v565
    %v567 = vpop.xlane.xlu0 %566
    %v568 = vmax.f32 %v567, 1e-06
    %v569 = vpack.c.bf16 %v563, %v563
    %vm570 = vcmask 261120
    %v572 = vsel %vm570, %v569, 0
    %574 = vmatprep.subr.bf16.mxu0 0
    %575 = vmatpush1.bf16.msra.mxu0 0
    %576 = vmatprep.subr.bf16.mxu0 0
    %577 = vmatpush1.bf16.msra.mxu0 0
    %578 = vmatprep.subr.bf16.mxu0 0
    %579 = vmatpush1.bf16.msra.mxu0 0
    %580 = vmatprep.subr.bf16.mxu0 0
    %581 = vmatpush1.bf16.msra.mxu0 0
    %582 = vmatprep.subr.bf16.mxu0 0
    %583 = vmatpush1.bf16.msra.mxu0 0
    %584 = vmatprep.subr.bf16.mxu0 0
    %585 = vmatpush1.bf16.msra.mxu0 0
    %586 = vmatprep.subr.bf16.mxu0 %v543
    %587 = vmatpush1.bf16.msra.mxu0 %v542
    %588 = vmatprep.subr.bf16.mxu0 %v537
    %589 = vmatpush1.bf16.msra.mxu0 %v536
    %590 = vmatprep.subr.bf16.mxu0 0
    %591 = vmatpush2.bf16.msra.mxu0 0
    %592 = vmatprep.subr.bf16.mxu0 0
    %593 = vmatpush2.bf16.msra.mxu0 0
    %594 = vmatprep.subr.bf16.mxu0 0
    %595 = vmatpush2.bf16.msra.mxu0 0
    %596 = vmatprep.subr.bf16.mxu0 0
    %597 = vmatpush2.bf16.msra.mxu0 0
    %598 = vmatprep.subr.bf16.mxu0 0
    %599 = vmatpush2.bf16.msra.mxu0 0
    %600 = vmatprep.subr.bf16.mxu0 0
    %601 = vmatpush2.bf16.msra.mxu0 0
    %602 = vmatprep.subr.bf16.mxu0 0
    %603 = vmatpush2.bf16.msra.mxu0 0
    %604 = vmatprep.subr.bf16.mxu0 0
    %605 = vmatpush2.bf16.msra.mxu0 0
    %606 = vmatprep.mubr.bf16.mxu0 0
    %607 = vmatmul.mubr.bf16.gmra.mxu0 %v572
    %v608 = vpop.f32.mrf.mxu0
    %v609 = vadd.f32 0.0, %v608
    %v610 = vpop.f32.mrf.mxu0
    %v611 = vadd.f32 0.0, %v610
    %v612 = vpop.f32.mrf.mxu0
    %v613 = vpop.f32.mrf.mxu0
    %614 = vdwg.mxu0
    %615 = vmatprep.subr.bf16.mxu0 0
    %616 = vmatpush1.bf16.msra.mxu0 0
    %617 = vmatprep.subr.bf16.mxu0 0
    %618 = vmatpush1.bf16.msra.mxu0 0
    %619 = vmatprep.subr.bf16.mxu0 0
    %620 = vmatpush1.bf16.msra.mxu0 0
    %621 = vmatprep.subr.bf16.mxu0 0
    %622 = vmatpush1.bf16.msra.mxu0 0
    %623 = vmatprep.subr.bf16.mxu0 0
    %624 = vmatpush1.bf16.msra.mxu0 0
    %625 = vmatprep.subr.bf16.mxu0 0
    %626 = vmatpush1.bf16.msra.mxu0 0
    %627 = vmatprep.subr.bf16.mxu0 %v545
    %628 = vmatpush1.bf16.msra.mxu0 %v544
    %629 = vmatprep.subr.bf16.mxu0 %v539
    %630 = vmatpush1.bf16.msra.mxu0 %v538
    %631 = vmatprep.subr.bf16.mxu0 0
    %632 = vmatpush2.bf16.msra.mxu0 0
    %633 = vmatprep.subr.bf16.mxu0 0
    %634 = vmatpush2.bf16.msra.mxu0 0
    %635 = vmatprep.subr.bf16.mxu0 0
    %636 = vmatpush2.bf16.msra.mxu0 0
    %637 = vmatprep.subr.bf16.mxu0 0
    %638 = vmatpush2.bf16.msra.mxu0 0
    %639 = vmatprep.subr.bf16.mxu0 0
    %640 = vmatpush2.bf16.msra.mxu0 0
    %641 = vmatprep.subr.bf16.mxu0 0
    %642 = vmatpush2.bf16.msra.mxu0 0
    %643 = vmatprep.subr.bf16.mxu0 0
    %644 = vmatpush2.bf16.msra.mxu0 0
    %645 = vmatprep.subr.bf16.mxu0 0
    %646 = vmatpush2.bf16.msra.mxu0 0
    %647 = vmatprep.mubr.bf16.mxu0 0
    %648 = vmatmul.mubr.bf16.gmra.mxu0 %v572
    %v649 = vpop.f32.mrf.mxu0
    %v650 = vadd.f32 0.0, %v649
    %v651 = vpop.f32.mrf.mxu0
    %v652 = vadd.f32 0.0, %v651
    %v653 = vpop.f32.mrf.mxu0
    %v654 = vpop.f32.mrf.mxu0
    %655 = vdwg.mxu0
    %656 = vmatprep.subr.bf16.mxu0 0
    %657 = vmatpush1.bf16.msra.mxu0 0
    %658 = vmatprep.subr.bf16.mxu0 0
    %659 = vmatpush1.bf16.msra.mxu0 0
    %660 = vmatprep.subr.bf16.mxu0 0
    %661 = vmatpush1.bf16.msra.mxu0 0
    %662 = vmatprep.subr.bf16.mxu0 0
    %663 = vmatpush1.bf16.msra.mxu0 0
    %664 = vmatprep.subr.bf16.mxu0 0
    %665 = vmatpush1.bf16.msra.mxu0 0
    %666 = vmatprep.subr.bf16.mxu0 0
    %667 = vmatpush1.bf16.msra.mxu0 0
    %668 = vmatprep.subr.bf16.mxu0 %v547
    %669 = vmatpush1.bf16.msra.mxu0 %v546
    %670 = vmatprep.subr.bf16.mxu0 %v541
    %671 = vmatpush1.bf16.msra.mxu0 %v540
    %672 = vmatprep.subr.bf16.mxu0 0
    %673 = vmatpush2.bf16.msra.mxu0 0
    %674 = vmatprep.subr.bf16.mxu0 0
    %675 = vmatpush2.bf16.msra.mxu0 0
    %676 = vmatprep.subr.bf16.mxu0 0
    %677 = vmatpush2.bf16.msra.mxu0 0
    %678 = vmatprep.subr.bf16.mxu0 0
    %679 = vmatpush2.bf16.msra.mxu0 0
    %680 = vmatprep.subr.bf16.mxu0 0
    %681 = vmatpush2.bf16.msra.mxu0 0
    %682 = vmatprep.subr.bf16.mxu0 0
    %683 = vmatpush2.bf16.msra.mxu0 0
    %684 = vmatprep.subr.bf16.mxu0 0
    %685 = vmatpush2.bf16.msra.mxu0 0
    %686 = vmatprep.subr.bf16.mxu0 0
    %687 = vmatpush2.bf16.msra.mxu0 0
    %688 = vmatprep.mubr.bf16.mxu0 0
    %689 = vmatmul.mubr.bf16.gmra.mxu0 %v572
    %v690 = vpop.f32.mrf.mxu0
    %v691 = vadd.f32 0.0, %v690
    %v692 = vpop.f32.mrf.mxu0
    %v693 = vadd.f32 0.0, %v692
    %v694 = vpop.f32.mrf.mxu0
    %v695 = vpop.f32.mrf.mxu0
    %696 = vdwg.mxu0
    %v697 = vrcp.pop %v568
    %v698 = vmul.f32 %v609, %v697
    %v699 = vmul.f32 %v611, %v697
    %v700 = vmul.f32 %v650, %v697
    %v701 = vmul.f32 %v652, %v697
    %v702 = vmul.f32 %v691, %v697
    %v703 = vmul.f32 %v693, %v697
    %v704 = vpack.c.bf16 %v698, %v698
    %v705 = vpack.c.bf16 %v699, %v699
    %v706 = vpack.c.bf16 %v700, %v700
    %v707 = vpack.c.bf16 %v701, %v701
    %v708 = vpack.c.bf16 %v702, %v702
    %v709 = vpack.c.bf16 %v703, %v703
    %v710 = vld [vmem:[#allocation6] sm:$0xf]
    %v711 = vld [vmem:[#allocation6 + $0x4] sm:$0xf]
    %v712 = vld [vmem:[#allocation6 + $0x8] sm:$0xf]
    %v713 = vld [vmem:[#allocation6 + $0xc] sm:$0xf]
    %v714 = vld [vmem:[#allocation6 + $0x10] sm:$0xf]
    %v715 = vld [vmem:[#allocation6 + $0x14] sm:$0xf]
    %v716 = vld [vmem:[#allocation6 + $0x18] sm:$0xf]
    %v717 = vld [vmem:[#allocation6 + $0x1c] sm:$0xf]
    %v718 = vld [vmem:[#allocation6 + $0x20] sm:$0xf]
    %v719 = vld [vmem:[#allocation6 + $0x24] sm:$0xf]
    %v720 = vld [vmem:[#allocation6 + $0x28] sm:$0xf]
    %v721 = vld [vmem:[#allocation6 + $0x2c] sm:$0xf]
    %v722 = vld [vmem:[#allocation6 + $0x30] sm:$0xf]
    %v723 = vld [vmem:[#allocation6 + $0x34] sm:$0xf]
    %v724 = vld [vmem:[#allocation6 + $0x38] sm:$0xf]
    %v725 = vld [vmem:[#allocation6 + $0x3c] sm:$0xf]
    %v726 = vld [vmem:[#allocation6 + $0x40] sm:$0xf]
    %v727 = vld [vmem:[#allocation6 + $0x44] sm:$0xf]
    %v728 = vld [vmem:[#allocation6 + $0x48] sm:$0xf]
    %v729 = vld [vmem:[#allocation6 + $0x4c] sm:$0xf]
    %v730 = vld [vmem:[#allocation6 + $0x50] sm:$0xf]
    %v731 = vld [vmem:[#allocation6 + $0x54] sm:$0xf]
    %v732 = vld [vmem:[#allocation6 + $0x58] sm:$0xf]
    %v733 = vld [vmem:[#allocation6 + $0x5c] sm:$0xf]
    %v734 = vld [vmem:[#allocation6 + $0x60] sm:$0xf]
    %v735 = vld [vmem:[#allocation6 + $0x64] sm:$0xf]
    %v736 = vld [vmem:[#allocation6 + $0x68] sm:$0xf]
    %v737 = vld [vmem:[#allocation6 + $0x6c] sm:$0xf]
    %v738 = vld [vmem:[#allocation6 + $0x70] sm:$0xf]
    %v739 = vld [vmem:[#allocation6 + $0x74] sm:$0xf]
    %v740 = vld [vmem:[#allocation6 + $0x78] sm:$0xf]
    %v741 = vld [vmem:[#allocation6 + $0x7c] sm:$0xf]
    %v742 = vld [vmem:[#allocation6 + $0x80] sm:$0xf]
    %v743 = vld [vmem:[#allocation6 + $0x84] sm:$0xf]
    %v744 = vld [vmem:[#allocation6 + $0x88] sm:$0xf]
    %v745 = vld [vmem:[#allocation6 + $0x8c] sm:$0xf]
    %v746 = vld [vmem:[#allocation6 + $0x90] sm:$0xf]
    %v747 = vld [vmem:[#allocation6 + $0x94] sm:$0xf]
    %v748 = vld [vmem:[#allocation6 + $0x98] sm:$0xf]
    %v749 = vld [vmem:[#allocation6 + $0x9c] sm:$0xf]
    %v750 = vld [vmem:[#allocation6 + $0xa0] sm:$0xf]
    %v751 = vld [vmem:[#allocation6 + $0xa4] sm:$0xf]
    %v752 = vld [vmem:[#allocation6 + $0xa8] sm:$0xf]
    %v753 = vld [vmem:[#allocation6 + $0xac] sm:$0xf]
    %v754 = vld [vmem:[#allocation6 + $0xb0] sm:$0xf]
    %v755 = vld [vmem:[#allocation6 + $0xb4] sm:$0xf]
    %v756 = vld [vmem:[#allocation6 + $0xb8] sm:$0xf]
    %v757 = vld [vmem:[#allocation6 + $0xbc] sm:$0xf]
    %v758 = vld [vmem:[#allocation6 + $0xc0] sm:$0xf]
    %v759 = vld [vmem:[#allocation6 + $0xc4] sm:$0xf]
    %v760 = vld [vmem:[#allocation6 + $0xc8] sm:$0xf]
    %v761 = vld [vmem:[#allocation6 + $0xcc] sm:$0xf]
    %v762 = vld [vmem:[#allocation6 + $0xd0] sm:$0xf]
    %v763 = vld [vmem:[#allocation6 + $0xd4] sm:$0xf]
    %v764 = vld [vmem:[#allocation6 + $0xd8] sm:$0xf]
    %v765 = vld [vmem:[#allocation6 + $0xdc] sm:$0xf]
    %v766 = vld [vmem:[#allocation6 + $0xe0] sm:$0xf]
    %v767 = vld [vmem:[#allocation6 + $0xe4] sm:$0xf]
    %v768 = vld [vmem:[#allocation6 + $0xe8] sm:$0xf]
    %v769 = vld [vmem:[#allocation6 + $0xec] sm:$0xf]
    %v770 = vld [vmem:[#allocation6 + $0xf0] sm:$0xf]
    %v771 = vld [vmem:[#allocation6 + $0xf4] sm:$0xf]
    %v772 = vld [vmem:[#allocation6 + $0xf8] sm:$0xf]
    %v773 = vld [vmem:[#allocation6 + $0xfc] sm:$0xf]
    %v774 = vld [vmem:[#allocation6 + $0x100] sm:$0xf]
    %v775 = vld [vmem:[#allocation6 + $0x104] sm:$0xf]
    %v776 = vld [vmem:[#allocation6 + $0x108] sm:$0xf]
    %v777 = vld [vmem:[#allocation6 + $0x10c] sm:$0xf]
    %v778 = vld [vmem:[#allocation6 + $0x110] sm:$0xf]
    %v779 = vld [vmem:[#allocation6 + $0x114] sm:$0xf]
    %v780 = vld [vmem:[#allocation6 + $0x118] sm:$0xf]
    %v781 = vld [vmem:[#allocation6 + $0x11c] sm:$0xf]
    %v782 = vld [vmem:[#allocation6 + $0x120] sm:$0xf]
    %v783 = vld [vmem:[#allocation6 + $0x124] sm:$0xf]
    %v784 = vld [vmem:[#allocation6 + $0x128] sm:$0xf]
    %v785 = vld [vmem:[#allocation6 + $0x12c] sm:$0xf]
    %v786 = vld [vmem:[#allocation6 + $0x130] sm:$0xf]
    %v787 = vld [vmem:[#allocation6 + $0x134] sm:$0xf]
    %v788 = vld [vmem:[#allocation6 + $0x138] sm:$0xf]
    %v789 = vld [vmem:[#allocation6 + $0x13c] sm:$0xf]
    %v790 = vld [vmem:[#allocation6 + $0x140] sm:$0xf]
    %v791 = vld [vmem:[#allocation6 + $0x144] sm:$0xf]
    %v792 = vld [vmem:[#allocation6 + $0x148] sm:$0xf]
    %v793 = vld [vmem:[#allocation6 + $0x14c] sm:$0xf]
    %v794 = vld [vmem:[#allocation6 + $0x150] sm:$0xf]
    %v795 = vld [vmem:[#allocation6 + $0x154] sm:$0xf]
    %v796 = vld [vmem:[#allocation6 + $0x158] sm:$0xf]
    %v797 = vld [vmem:[#allocation6 + $0x15c] sm:$0xf]
    %v798 = vld [vmem:[#allocation6 + $0x160] sm:$0xf]
    %v799 = vld [vmem:[#allocation6 + $0x164] sm:$0xf]
    %v800 = vld [vmem:[#allocation6 + $0x168] sm:$0xf]
    %v801 = vld [vmem:[#allocation6 + $0x16c] sm:$0xf]
    %v802 = vld [vmem:[#allocation6 + $0x170] sm:$0xf]
    %v803 = vld [vmem:[#allocation6 + $0x174] sm:$0xf]
    %v804 = vld [vmem:[#allocation6 + $0x178] sm:$0xf]
    %v805 = vld [vmem:[#allocation6 + $0x17c] sm:$0xf]
    %v806 = vld [vmem:[%s4] sm:$0x1]
    %v808 = vlaneseq
    %v809 = vshrl.u32 %v808, 7
    %v810 = vsub.s32 0, %v809
    %v811 = vrot.slane %v806, %v810
    %v909 = vunpack.c.l.b16 %v710
    %v910 = vunpack.c.l.b16 %v711
    %v911 = vunpack.c.l.b16 %v712
    %v912 = vunpack.c.l.b16 %v713
    %v913 = vunpack.c.l.b16 %v714
    %v914 = vunpack.c.l.b16 %v715
    %v915 = vunpack.c.l.b16 %v716
    %v916 = vunpack.c.l.b16 %v717
    %v917 = vunpack.c.l.b16 %v718
    %v918 = vunpack.c.l.b16 %v719
    %v919 = vunpack.c.l.b16 %v720
    %v920 = vunpack.c.l.b16 %v721
    %v921 = vunpack.c.l.b16 %v722
    %v922 = vunpack.c.l.b16 %v723
    %v923 = vunpack.c.l.b16 %v724
    %v924 = vunpack.c.l.b16 %v725
    %v925 = vunpack.c.l.b16 %v726
    %v926 = vunpack.c.l.b16 %v727
    %v927 = vunpack.c.l.b16 %v728
    %v928 = vunpack.c.l.b16 %v729
    %v929 = vunpack.c.l.b16 %v730
    %v930 = vunpack.c.l.b16 %v731
    %v931 = vunpack.c.l.b16 %v732
    %v932 = vunpack.c.l.b16 %v733
    %v933 = vunpack.c.l.b16 %v734
    %v934 = vunpack.c.l.b16 %v735
    %v935 = vunpack.c.l.b16 %v736
    %v936 = vunpack.c.l.b16 %v737
    %v937 = vunpack.c.l.b16 %v738
    %v938 = vunpack.c.l.b16 %v739
    %v939 = vunpack.c.l.b16 %v740
    %v940 = vunpack.c.l.b16 %v741
    %v941 = vunpack.c.l.b16 %v742
    %v942 = vunpack.c.l.b16 %v743
    %v943 = vunpack.c.l.b16 %v744
    %v944 = vunpack.c.l.b16 %v745
    %v945 = vunpack.c.l.b16 %v746
    %v946 = vunpack.c.l.b16 %v747
    %v947 = vunpack.c.l.b16 %v748
    %v948 = vunpack.c.l.b16 %v749
    %v949 = vunpack.c.l.b16 %v750
    %v950 = vunpack.c.l.b16 %v751
    %v951 = vunpack.c.l.b16 %v752
    %v952 = vunpack.c.l.b16 %v753
    %v953 = vunpack.c.l.b16 %v754
    %v954 = vunpack.c.l.b16 %v755
    %v955 = vunpack.c.l.b16 %v756
    %v956 = vunpack.c.l.b16 %v757
    %v957 = vunpack.c.l.b16 %v758
    %v958 = vunpack.c.l.b16 %v759
    %v959 = vunpack.c.l.b16 %v760
    %v960 = vunpack.c.l.b16 %v761
    %v961 = vunpack.c.l.b16 %v762
    %v962 = vunpack.c.l.b16 %v763
    %v963 = vunpack.c.l.b16 %v764
    %v964 = vunpack.c.l.b16 %v765
    %v965 = vunpack.c.l.b16 %v766
    %v966 = vunpack.c.l.b16 %v767
    %v967 = vunpack.c.l.b16 %v768
    %v968 = vunpack.c.l.b16 %v769
    %v969 = vunpack.c.l.b16 %v770
    %v970 = vunpack.c.l.b16 %v771
    %v971 = vunpack.c.l.b16 %v772
    %v972 = vunpack.c.l.b16 %v773
    %v973 = vunpack.c.l.b16 %v774
    %v974 = vunpack.c.l.b16 %v775
    %v975 = vunpack.c.l.b16 %v776
    %v976 = vunpack.c.l.b16 %v777
    %v977 = vunpack.c.l.b16 %v778
    %v978 = vunpack.c.l.b16 %v779
    %v979 = vunpack.c.l.b16 %v780
    %v980 = vunpack.c.l.b16 %v781
    %v981 = vunpack.c.l.b16 %v782
    %v982 = vunpack.c.l.b16 %v783
    %v983 = vunpack.c.l.b16 %v784
    %v984 = vunpack.c.l.b16 %v785
    %v985 = vunpack.c.l.b16 %v786
    %v986 = vunpack.c.l.b16 %v787
    %v987 = vunpack.c.l.b16 %v788
    %v988 = vunpack.c.l.b16 %v789
    %v989 = vunpack.c.l.b16 %v790
    %v990 = vunpack.c.l.b16 %v791
    %v991 = vunpack.c.l.b16 %v792
    %v992 = vunpack.c.l.b16 %v793
    %v993 = vunpack.c.l.b16 %v794
    %v994 = vunpack.c.l.b16 %v795
    %v995 = vunpack.c.l.b16 %v796
    %v996 = vunpack.c.l.b16 %v797
    %v997 = vunpack.c.l.b16 %v798
    %v998 = vunpack.c.l.b16 %v799
    %v999 = vunpack.c.l.b16 %v800
    %v1000 = vunpack.c.l.b16 %v801
    %v1001 = vunpack.c.l.b16 %v802
    %v1002 = vunpack.c.l.b16 %v803
    %v1003 = vunpack.c.l.b16 %v804
    %v1004 = vunpack.c.l.b16 %v805
    %v1005 = vpack.c.b16 %v910, %v909
    %v1006 = vpack.c.b16 %v912, %v911
    %v1007 = vpack.c.b16 %v914, %v913
    %v1008 = vpack.c.b16 %v916, %v915
    %v1009 = vpack.c.b16 %v918, %v917
    %v1010 = vpack.c.b16 %v920, %v919
    %v1011 = vpack.c.b16 %v922, %v921
    %v1012 = vpack.c.b16 %v924, %v923
    %v1013 = vpack.c.b16 %v926, %v925
    %v1014 = vpack.c.b16 %v928, %v927
    %v1015 = vpack.c.b16 %v930, %v929
    %v1016 = vpack.c.b16 %v932, %v931
    %v1017 = vpack.c.b16 %v934, %v933
    %v1018 = vpack.c.b16 %v936, %v935
    %v1019 = vpack.c.b16 %v938, %v937
    %v1020 = vpack.c.b16 %v940, %v939
    %v1021 = vpack.c.b16 %v942, %v941
    %v1022 = vpack.c.b16 %v944, %v943
    %v1023 = vpack.c.b16 %v946, %v945
    %v1024 = vpack.c.b16 %v948, %v947
    %v1025 = vpack.c.b16 %v950, %v949
    %v1026 = vpack.c.b16 %v952, %v951
    %v1027 = vpack.c.b16 %v954, %v953
    %v1028 = vpack.c.b16 %v956, %v955
    %v1029 = vpack.c.b16 %v958, %v957
    %v1030 = vpack.c.b16 %v960, %v959
    %v1031 = vpack.c.b16 %v962, %v961
    %v1032 = vpack.c.b16 %v964, %v963
    %v1033 = vpack.c.b16 %v966, %v965
    %v1034 = vpack.c.b16 %v968, %v967
    %v1035 = vpack.c.b16 %v970, %v969
    %v1036 = vpack.c.b16 %v972, %v971
    %v1037 = vpack.c.b16 %v974, %v973
    %v1038 = vpack.c.b16 %v976, %v975
    %v1039 = vpack.c.b16 %v978, %v977
    %v1040 = vpack.c.b16 %v980, %v979
    %v1041 = vpack.c.b16 %v982, %v981
    %v1042 = vpack.c.b16 %v984, %v983
    %v1043 = vpack.c.b16 %v986, %v985
    %v1044 = vpack.c.b16 %v988, %v987
    %v1045 = vpack.c.b16 %v990, %v989
    %v1046 = vpack.c.b16 %v992, %v991
    %v1047 = vpack.c.b16 %v994, %v993
    %v1048 = vpack.c.b16 %v996, %v995
    %v1049 = vpack.c.b16 %v998, %v997
    %v1050 = vpack.c.b16 %v1000, %v999
    %v1051 = vpack.c.b16 %v1002, %v1001
    %v1052 = vpack.c.b16 %v1004, %v1003
    %1101 = vmatprep.subr.bf16.mxu0 0
    %1102 = vmatpush1.bf16.msra.mxu0 %v1012
    %1103 = vmatprep.subr.bf16.mxu0 0
    %1104 = vmatpush1.bf16.msra.mxu0 %v1011
    %1105 = vmatprep.subr.bf16.mxu0 0
    %1106 = vmatpush1.bf16.msra.mxu0 %v1010
    %1107 = vmatprep.subr.bf16.mxu0 0
    %1108 = vmatpush1.bf16.msra.mxu0 %v1009
    %1109 = vmatprep.subr.bf16.mxu0 0
    %1110 = vmatpush1.bf16.msra.mxu0 %v1008
    %1111 = vmatprep.subr.bf16.mxu0 0
    %1112 = vmatpush1.bf16.msra.mxu0 %v1007
    %1113 = vmatprep.subr.bf16.mxu0 0
    %1114 = vmatpush1.bf16.msra.mxu0 %v1006
    %1115 = vmatprep.subr.bf16.mxu0 0
    %1116 = vmatpush1.bf16.msra.mxu0 %v1005
    %1117 = vmatprep.subr.bf16.mxu0 0
    %1118 = vmatpush2.bf16.msra.mxu0 %v1020
    %1119 = vmatprep.subr.bf16.mxu0 0
    %1120 = vmatpush2.bf16.msra.mxu0 %v1019
    %1121 = vmatprep.subr.bf16.mxu0 0
    %1122 = vmatpush2.bf16.msra.mxu0 %v1018
    %1123 = vmatprep.subr.bf16.mxu0 0
    %1124 = vmatpush2.bf16.msra.mxu0 %v1017
    %1125 = vmatprep.subr.bf16.mxu0 0
    %1126 = vmatpush2.bf16.msra.mxu0 %v1016
    %1127 = vmatprep.subr.bf16.mxu0 0
    %1128 = vmatpush2.bf16.msra.mxu0 %v1015
    %1129 = vmatprep.subr.bf16.mxu0 0
    %1130 = vmatpush2.bf16.msra.mxu0 %v1014
    %1131 = vmatprep.subr.bf16.mxu0 0
    %1132 = vmatpush2.bf16.msra.mxu0 %v1013
    %1133 = vmatprep.mubr.bf16.mxu0 %v705
    %1134 = vmatmul.mubr.bf16.gmra.mxu0 %v704
    %v1135 = vpop.f32.mrf.mxu0
    %v1136 = vadd.f32 %v811, %v1135
    %v1137 = vpop.f32.mrf.mxu0
    %v1138 = vpop.f32.mrf.mxu0
    %v1139 = vpop.f32.mrf.mxu0
    %1140 = vdwg.mxu0
    %1141 = vmatprep.subr.bf16.mxu0 0
    %1142 = vmatpush1.bf16.msra.mxu0 %v1028
    %1143 = vmatprep.subr.bf16.mxu0 0
    %1144 = vmatpush1.bf16.msra.mxu0 %v1027
    %1145 = vmatprep.subr.bf16.mxu0 0
    %1146 = vmatpush1.bf16.msra.mxu0 %v1026
    %1147 = vmatprep.subr.bf16.mxu0 0
    %1148 = vmatpush1.bf16.msra.mxu0 %v1025
    %1149 = vmatprep.subr.bf16.mxu0 0
    %1150 = vmatpush1.bf16.msra.mxu0 %v1024
    %1151 = vmatprep.subr.bf16.mxu0 0
    %1152 = vmatpush1.bf16.msra.mxu0 %v1023
    %1153 = vmatprep.subr.bf16.mxu0 0
    %1154 = vmatpush1.bf16.msra.mxu0 %v1022
    %1155 = vmatprep.subr.bf16.mxu0 0
    %1156 = vmatpush1.bf16.msra.mxu0 %v1021
    %1157 = vmatprep.subr.bf16.mxu0 0
    %1158 = vmatpush2.bf16.msra.mxu0 %v1036
    %1159 = vmatprep.subr.bf16.mxu0 0
    %1160 = vmatpush2.bf16.msra.mxu0 %v1035
    %1161 = vmatprep.subr.bf16.mxu0 0
    %1162 = vmatpush2.bf16.msra.mxu0 %v1034
    %1163 = vmatprep.subr.bf16.mxu0 0
    %1164 = vmatpush2.bf16.msra.mxu0 %v1033
    %1165 = vmatprep.subr.bf16.mxu0 0
    %1166 = vmatpush2.bf16.msra.mxu0 %v1032
    %1167 = vmatprep.subr.bf16.mxu0 0
    %1168 = vmatpush2.bf16.msra.mxu0 %v1031
    %1169 = vmatprep.subr.bf16.mxu0 0
    %1170 = vmatpush2.bf16.msra.mxu0 %v1030
    %1171 = vmatprep.subr.bf16.mxu0 0
    %1172 = vmatpush2.bf16.msra.mxu0 %v1029
    %1173 = vmatprep.mubr.bf16.mxu0 %v707
    %1174 = vmatmul.mubr.bf16.gmra.mxu0 %v706
    %v1175 = vpop.f32.mrf.mxu0
    %v1176 = vadd.f32 %v1136, %v1175
    %v1177 = vpop.f32.mrf.mxu0
    %v1178 = vpop.f32.mrf.mxu0
    %v1179 = vpop.f32.mrf.mxu0
    %1180 = vdwg.mxu0
    %1181 = vmatprep.subr.bf16.mxu0 0
    %1182 = vmatpush1.bf16.msra.mxu0 %v1044
    %1183 = vmatprep.subr.bf16.mxu0 0
    %1184 = vmatpush1.bf16.msra.mxu0 %v1043
    %1185 = vmatprep.subr.bf16.mxu0 0
    %1186 = vmatpush1.bf16.msra.mxu0 %v1042
    %1187 = vmatprep.subr.bf16.mxu0 0
    %1188 = vmatpush1.bf16.msra.mxu0 %v1041
    %1189 = vmatprep.subr.bf16.mxu0 0
    %1190 = vmatpush1.bf16.msra.mxu0 %v1040
    %1191 = vmatprep.subr.bf16.mxu0 0
    %1192 = vmatpush1.bf16.msra.mxu0 %v1039
    %1193 = vmatprep.subr.bf16.mxu0 0
    %1194 = vmatpush1.bf16.msra.mxu0 %v1038
    %1195 = vmatprep.subr.bf16.mxu0 0
    %1196 = vmatpush1.bf16.msra.mxu0 %v1037
    %1197 = vmatprep.subr.bf16.mxu0 0
    %1198 = vmatpush2.bf16.msra.mxu0 %v1052
    %1199 = vmatprep.subr.bf16.mxu0 0
    %1200 = vmatpush2.bf16.msra.mxu0 %v1051
    %1201 = vmatprep.subr.bf16.mxu0 0
    %1202 = vmatpush2.bf16.msra.mxu0 %v1050
    %1203 = vmatprep.subr.bf16.mxu0 0
    %1204 = vmatpush2.bf16.msra.mxu0 %v1049
    %1205 = vmatprep.subr.bf16.mxu0 0
    %1206 = vmatpush2.bf16.msra.mxu0 %v1048
    %1207 = vmatprep.subr.bf16.mxu0 0
    %1208 = vmatpush2.bf16.msra.mxu0 %v1047
    %1209 = vmatprep.subr.bf16.mxu0 0
    %1210 = vmatpush2.bf16.msra.mxu0 %v1046
    %1211 = vmatprep.subr.bf16.mxu0 0
    %1212 = vmatpush2.bf16.msra.mxu0 %v1045
    %1213 = vmatprep.mubr.bf16.mxu0 %v709
    %1214 = vmatmul.mubr.bf16.gmra.mxu0 %v708
    %v1215 = vpop.f32.mrf.mxu0
    %v1216 = vadd.f32 %v1176, %v1215
    %v1217 = vpop.f32.mrf.mxu0
    %v1218 = vpop.f32.mrf.mxu0
    %v1219 = vpop.f32.mrf.mxu0
    %1220 = vdwg.mxu0
    %vm1221 = vcmp.lt.s32.totalorder %v62, 32
    %v1222 = vsel %vm1221, %v1216, -inf
    %vm1223 = vcmask 1043456
    %v1224 = vsel %vm1223, %v1222, -inf
    %1225 = vmax.xlane.f32.xlu0 %v1224
    %v1226 = vpop.xlane.xlu0 %1225
    %v1227 = vsub.f32 %v1222, %v1226
    %v1228 = vmul.f32 %v1227, 1.442695
    %v1229 = vpow.pop %v1228
    %v1230 = vsel %vm1223, %v1229, 0.0
    %1231 = vadd.xlane.f32.xlu0 %v1230
    %v1232 = vpop.xlane.xlu0 %1231
    %v1233 = vrcp.pop %v1232
    %v1234 = vmul.f32 %v1229, %v1233
    %1235 = vst [vmem:[#allocation9] sm:$0xf] %v1234
    %v1236 = vld [vmem:[%s5] sm:$0xf]
    %v1237 = vlog2.pop %v1232
    %v1238 = vmul.f32 %v1237, 0.6931472
    %v1239 = vadd.f32 %v1226, %v1238
    %1240 = vset.pattern.permute.xlu0 0
    %1241 = vperm.xlu0 %1240, %v1236
    %v1242 = vpop.permute.xlu0 %1241
    %vm1243 = vcmp.eq.s32.totalorder %v62, %v1242
    %v1244 = vsel %vm1243, %v1222, 0.0
    %v1245 = vsel %vm1223, %v1244, 0.0
    %1246 = vadd.xlane.f32.xlu0 %v1245
    %v1247 = vpop.xlane.xlu0 %1246
    %v1248 = vsub.f32 %v1239, %v1247
    %vm1249 = vcmask 3072
    %v1250 = vsel %vm1249, %v1248, 0.0
    %1251 = vadd.xlane.f32.xlu0 %v1250
    %v1252 = vpop.xlane.xlu0 %1251
    %v1253 = vrot.slane %v1252, 4
    %v1254 = vadd.f32 %v1252, %v1253
    %v1255 = vrot.slane %v1254, 2
    %v1256 = vadd.f32 %v1254, %v1255
    %v1257 = vrot.slane %v1256, 1
    %v1258 = vadd.f32 %v1256, %v1257
    %s1259 = vtos %v1258
    %s1260 = smul.f32 %s1259, 0.25
    %s1261 = scalar_lea.smem [#allocation8], 0
    %1262 = sst [smem:[%s1261]] %s1260
    %vm1263 = vcmp.ge.f32.partialorder %v1222, %v1226
    %v1264 = vsel %vm1263, %v62, 128
    %v1265 = vsel %vm1223, %v1264, 2147483647
    %v1266 = vand.u32 %v1265, 65535
    %v1267 = vshra.s32 %v1265, 16
    %v1268 = vcvt.s32.f32 %v1266
    %v1269 = vcvt.s32.f32 %v1267
    %1270 = vmin.xlane.f32.xlu0 %v1269
    %v1271 = vpop.xlane.xlu0 %1270
    %vm1272 = vcmp.eq.f32.partialorder %v1269, %v1271
    %v1273 = vsel %vm1272, %v1268, inf
    %1274 = vmin.xlane.f32.xlu0 %v1273
    %v1275 = vpop.xlane.xlu0 %1274
    %v1276 = vcvt.f32.s32 %v1275
    %v1277 = vcvt.f32.s32 %v1271
    %v1278 = vshll.u32 %v1277, 16
    %v1279 = vadd.s32 %v1278, %v1276
    %1280 = vst.msk [vmem:[%s8] sm:$0xf] %vm1249, %v1279
    // Predicated region
    $region34: #{my_model_forward.1} parent=1 // pred_check
      _
    $region35: #{my_model_forward.1} parent=1 // pred_check_branch
      %1282 = sbr.rel (0) target = $region37
    $region36: #{my_model_forward.1} parent=1 // pred_region
      %s1284 = ssub.s32 16, 16
      %1285 = vsyncadd [#allocation5], %s1284
      %1288 = dma.smem_to_hbm [#allocation8], 16, %s6, [#allocation5]
    $region37: #{my_model_forward.1} parent=1 // pred_fallthru
      _
    // Predicated region
    $region38: #{my_model_forward.1} parent=1 // pred_check
      _
    $region39: #{my_model_forward.1} parent=1 // pred_check_branch
      %1290 = sbr.rel (0) target = $region41
    $region40: #{my_model_forward.1} parent=1 // pred_region
      %s1292 = ssub.s32 64, 64
      %1293 = vsyncadd [#allocation4], %s1292
      %s1295 = sshll.u32 [#allocation9], 4
      %s1296 = int_to_ptr.vmem [resolvable:$true] %s1295
      %1298 = dma.vmem_to_hbm [thread:$0]  %s1296, 64, %s7, [#allocation4]
    $region41: #{my_model_forward.1} parent=1 // pred_fallthru
      _
    // Predicated region
    $region42: #{my_model_forward.1} parent=1 // pred_check
      _
    $region43: #{my_model_forward.1} parent=1 // pred_check_branch
      %1300 = sbr.rel (0) target = $region45
    $region44: #{my_model_forward.1} parent=1 // pred_region
      _
    $region45: #{my_model_forward.1} parent=1 // pred_fallthru
      _
    // Predicated region
    $region46: #{my_model_forward.1} parent=1 // pred_check
      _
    $region47: #{my_model_forward.1} parent=1 // pred_check_branch
      %1302 = sbr.rel (0) target = $region49
    $region48: #{my_model_forward.1} parent=1 // pred_region
      %1303 = dma.done [#allocation5], 16
    $region49: #{my_model_forward.1} parent=1 // pred_fallthru
      _
    // Predicated region
    $region50: #{my_model_forward.1} parent=1 // pred_check
      _
    $region51: #{my_model_forward.1} parent=1 // pred_check_branch
      %1305 = sbr.rel (0) target = $region53
    $region52: #{my_model_forward.1} parent=1 // pred_region
      %1306 = dma.done [#allocation4], 64
    $region53: #{my_model_forward.1} parent=1 // pred_fallthru
      _
    // Predicated region
    $region54: #{my_model_forward.1} parent=1 // pred_check
      _
    $region55: #{my_model_forward.1} parent=1 // pred_check_branch
      %1308 = sbr.rel (0) target = $region57
    $region56: #{my_model_forward.1} parent=1 // pred_region
      _
    $region57: #{my_model_forward.1} parent=1 // pred_fallthru
      _
    %1309 = sfence
    %1310 = vsyncpa [#allocation3], 1
    %1311 = vsyncpa [#allocation7], 1
    %1312 = vsyncpa [#allocation4], 1
    %1313 = vsyncpa [#allocation5], 1

</llo_original>
